<compile_context>
chip_gen: v6e
topology: v6e:2x2x1
jax: 0.10.0
libtpu: 0.0.40
codegen_flags: <defaults>
</compile_context>

<pallas_src>
import functools
import math

import jax
import jax.numpy as jnp
from jax.experimental import pallas as pl
from jax.experimental.pallas import tpu as pltpu

_LANE = 128


def _round_up(v, m):
    return (v + m - 1) // m * m


def _pick_tile(n_pad, pref):
    """Largest multiple of 128 <= pref that divides n_pad (n_pad % 128 == 0)."""
    t = min(_round_up(pref, _LANE), n_pad)
    while n_pad % t:
        t -= _LANE
    return max(t, _LANE)


# ----------------------------------------------------------------------------
# Fused GINConv kernel.
#   grid = (row tiles i, contraction tiles k over adjacency columns)
#   acc[i]  = (1+eps) * x[i-rows]            (k == 0)
#   acc[i] += adj[i, k] @ x[k]               (every k)
#   out[i]  = acc[i] @ Wt + b                (k == last)
# ----------------------------------------------------------------------------
def _ginconv_kernel(adj_ref, x_ref, x_rows_ref, wt_ref, b_ref, o_ref, acc_ref,
                    *, epsilon):
    # adj_ref:    [tile_m, tile_k]   adjacency block (row slab i, col slab k)
    # x_ref:      [tile_k, F_in]     node-feature block matching col slab k
    # x_rows_ref: [tile_m, F_in]     features of the rows in slab i (self term)
    # wt_ref:     [F_in, F_out_pad]  pre-transposed, lane-padded weight (resident)
    # b_ref:      [1, F_out_pad]     lane-padded bias (resident)
    # acc_ref:    [tile_m, F_in]     VMEM accumulator for `support`
    k = pl.program_id(1)

    @pl.when(k == 0)
    def _():
        acc_ref[...] = (1.0 + epsilon) * x_rows_ref[...]

    acc_ref[...] += jnp.dot(adj_ref[...], x_ref[...],
                            preferred_element_type=jnp.float32)

    @pl.when(k == pl.num_programs(1) - 1)
    def _():
        y = jnp.dot(acc_ref[...], wt_ref[...],
                    preferred_element_type=jnp.float32) + b_ref[...]
        o_ref[...] = y.astype(o_ref.dtype)


# ----------------------------------------------------------------------------
# Parameter init (mimics PyTorch nn.Linear.reset_parameters), pre-laid-out for
# the kernel: W.T padded to 128 output lanes, bias as [1, F_out_pad].
# ----------------------------------------------------------------------------
def init_ginconv_params(key, in_features, out_features, epsilon=0.0):
    kw, kb = jax.random.split(key)
    bound = 1.0 / math.sqrt(in_features)
    w = jax.random.uniform(kw, (out_features, in_features), jnp.float32, -bound, bound)
    b = jax.random.uniform(kb, (out_features,), jnp.float32, -bound, bound)

    f_out_pad = _round_up(max(out_features, _LANE), _LANE)
    wt_pad = jnp.zeros((in_features, f_out_pad), jnp.float32)
    wt_pad = wt_pad.at[:, :out_features].set(jnp.transpose(w))
    b_pad = jnp.zeros((1, f_out_pad), jnp.float32)
    b_pad = b_pad.at[:, :out_features].set(b)

    return {
        "w": w, "b_raw": b,                 # reference (PyTorch) layout
        "wt": wt_pad, "b": b_pad,           # kernel layout (pre-transposed, padded)
        "epsilon": float(epsilon),
        "f_out": out_features,
    }


# ----------------------------------------------------------------------------
# Forward pass: one fused pallas_call over a (row-tile, contraction-tile) grid.
# ----------------------------------------------------------------------------
def gin_conv_forward(params, x, adj, *, tile_m=256, tile_k=512):
    n, f_in = x.shape
    assert adj.shape == (n, n), adj.shape
    wt, b = params["wt"], params["b"]
    f_out_pad = wt.shape[1]
    epsilon = params["epsilon"]

    # Pad the node dim to a multiple of 128; padded rows/cols are zero so the
    # valid rows of the result are unchanged (sliced off at the end).
    n_pad = _round_up(max(n, _LANE), _LANE)
    if n_pad != n:
        x = jnp.pad(x, ((0, n_pad - n), (0, 0)))
        adj = jnp.pad(adj, ((0, n_pad - n), (0, n_pad - n)))

    tile_m = _pick_tile(n_pad, tile_m)
    tile_k = _pick_tile(n_pad, tile_k)
    grid = (n_pad // tile_m, n_pad // tile_k)

    flops = 2 * n_pad * n_pad * f_in + 2 * n_pad * f_in * f_out_pad
    bytes_accessed = 4 * (n_pad * n_pad            # adj
                          + 2 * n_pad * f_in       # x col blocks + x row slabs
                          + f_in * f_out_pad       # Wt
                          + f_out_pad              # bias
                          + n_pad * f_out_pad)     # output

    out = pl.pallas_call(
        functools.partial(_ginconv_kernel, epsilon=epsilon),
        out_shape=jax.ShapeDtypeStruct((n_pad, f_out_pad), jnp.float32),
        grid_spec=pltpu.PrefetchScalarGridSpec(
            num_scalar_prefetch=0,
            grid=grid,
            in_specs=[
                pl.BlockSpec((tile_m, tile_k), lambda i, k: (i, k)),    # adj block
                pl.BlockSpec((tile_k, f_in), lambda i, k: (k, 0)),      # x (col slab)
                pl.BlockSpec((tile_m, f_in), lambda i, k: (i, 0)),      # x (row slab)
                pl.BlockSpec((f_in, f_out_pad), lambda i, k: (0, 0)),   # Wt, resident
                pl.BlockSpec((1, f_out_pad), lambda i, k: (0, 0)),      # bias, resident
            ],
            out_specs=pl.BlockSpec((tile_m, f_out_pad), lambda i, k: (i, 0)),
            scratch_shapes=[pltpu.VMEM((tile_m, f_in), jnp.float32)],
        ),
        compiler_params=pltpu.CompilerParams(
            dimension_semantics=("parallel", "arbitrary"),
        ),
        cost_estimate=pl.CostEstimate(
            flops=flops, transcendentals=0, bytes_accessed=bytes_accessed),
    )(adj, x, x, wt, b)

    return out[:n, :params["f_out"]]


# ----------------------------------------------------------------------------
# Pure-JAX reference (mirrors the PyTorch forward)
# ----------------------------------------------------------------------------
def gin_conv_forward_ref(params, x, adj):
    n = adj.shape[0]
    adj2 = adj + (1.0 + params["epsilon"]) * jnp.eye(n, dtype=adj.dtype)
    support = adj2 @ x
    return support @ params["w"].T + params["b_raw"]


if __name__ == "__main__":
    key = jax.random.PRNGKey(0)
    k_param, k_x, k_adj = jax.random.split(key, 3)

    num_nodes = 256          # grid = (row tiles, contraction tiles)
    in_features = 16
    out_features = 32
    epsilon = 0.0

    params = init_ginconv_params(k_param, in_features, out_features, epsilon)
    x = jax.random.normal(k_x, (num_nodes, in_features), dtype=jnp.float32)

    # Random symmetric 0/1 adjacency, no self loops (GINConv adds (1+eps)*I itself).
    upper = (jax.random.uniform(k_adj, (num_nodes, num_nodes)) < 0.1).astype(jnp.float32)
    adj = jnp.triu(upper, 1)
    adj = adj + adj.T

    out = gin_conv_forward(params, x, adj)
    out = jax.block_until_ready(out)

    ref = gin_conv_forward_ref(params, x, adj)
    assert out.shape == (num_nodes, out_features), out.shape
    max_err = float(jnp.max(jnp.abs(out - ref)))
    assert jnp.allclose(out, ref, atol=5e-2, rtol=2e-2), f"mismatch, max_err={max_err}"

    print("KERNEL_OK")
</pallas_src>

<mosaic_0001>
module attributes {stable_mosaic.version = 11 : i64} {
  func.func @_ginconv_kernel(%arg0: i32, %arg1: i32, %arg2: memref<256x256xf32, #tpu.memory_space<vmem>>, %arg3: memref<256x16xf32, #tpu.memory_space<vmem>>, %arg4: memref<256x16xf32, #tpu.memory_space<vmem>>, %arg5: memref<16x128xf32, #tpu.memory_space<vmem>>, %arg6: memref<1x128xf32, #tpu.memory_space<vmem>>, %arg7: memref<256x128xf32, #tpu.memory_space<vmem>>, %arg8: memref<256x16xf32, #tpu.memory_space<vmem>>) attributes {dimension_semantics = [#tpu.dimension_semantics<parallel>, #tpu.dimension_semantics<arbitrary>], iteration_bounds = array<i64: 1, 1>, scalar_prefetch = 0 : i64, scratch_operands = 1 : i64, tpu.core_type = #tpu.core_type<tc>, window_params = [{transform_indices = @transform_0, window_bounds = array<i64: 256, 256>}, {transform_indices = @transform_1, window_bounds = array<i64: 256, 16>}, {transform_indices = @transform_2, window_bounds = array<i64: 256, 16>}, {pipeline_mode = #tpu.pipeline_mode<synchronous>, transform_indices = @transform_3, window_bounds = array<i64: 16, 128>}, {pipeline_mode = #tpu.pipeline_mode<synchronous>, transform_indices = @transform_4, window_bounds = array<i64: 1, 128>}, {transform_indices = @transform_5, window_bounds = array<i64: 256, 128>}]} {
    %c0_i32 = arith.constant 0 : i32
    %0 = arith.cmpi eq, %arg1, %c0_i32 : i32
    %1 = arith.extui %0 : i1 to i32
    %c0_i32_0 = arith.constant 0 : i32
    %2 = arith.cmpi ne, %1, %c0_i32_0 : i32
    scf.if %2 {
      %c0_10 = arith.constant 0 : index
      %c0_11 = arith.constant 0 : index
      %12 = vector.load %arg4[%c0_10, %c0_11] : memref<256x16xf32, #tpu.memory_space<vmem>>, vector<256x16xf32>
      %cst_12 = arith.constant 1.000000e+00 : f32
      %13 = vector.broadcast %cst_12 : f32 to vector<256x16xf32>
      %14 = arith.mulf %13, %12 : vector<256x16xf32>
      %c0_13 = arith.constant 0 : index
      %c0_14 = arith.constant 0 : index
      %15 = vector.load %arg8[%c0_13, %c0_14] : memref<256x16xf32, #tpu.memory_space<vmem>>, vector<256x16xf32>
      tpu.vector_store %arg8[%c0_13, %c0_14], %14 {strides = array<i32>} : memref<256x16xf32, #tpu.memory_space<vmem>>, vector<256x16xf32>,
    } else {
    }
    %c0 = arith.constant 0 : index
    %c0_1 = arith.constant 0 : index
    %3 = vector.load %arg8[%c0, %c0_1] : memref<256x16xf32, #tpu.memory_space<vmem>>, vector<256x16xf32>
    %c0_2 = arith.constant 0 : index
    %c0_3 = arith.constant 0 : index
    %4 = vector.load %arg2[%c0_2, %c0_3] : memref<256x256xf32, #tpu.memory_space<vmem>>, vector<256x256xf32>
    %c0_4 = arith.constant 0 : index
    %c0_5 = arith.constant 0 : index
    %5 = vector.load %arg3[%c0_4, %c0_5] : memref<256x16xf32, #tpu.memory_space<vmem>>, vector<256x16xf32>
    %cst = arith.constant dense<0.000000e+00> : vector<256x16xf32>
    %6 = tpu.matmul %4, %5, %cst {dimension_numbers = #tpu.dot_dimension_numbers<[1], [0], [0], [1], [0, 0, 1, 1], [], []>} : vector<256x256xf32>, vector<256x16xf32>, vector<256x16xf32> -> vector<256x16xf32>
    %7 = arith.addf %3, %6 : vector<256x16xf32>
    %c0_6 = arith.constant 0 : index
    %c0_7 = arith.constant 0 : index
    %8 = vector.load %arg8[%c0_6, %c0_7] : memref<256x16xf32, #tpu.memory_space<vmem>>, vector<256x16xf32>
    tpu.vector_store %arg8[%c0_6, %c0_7], %7 {strides = array<i32>} : memref<256x16xf32, #tpu.memory_space<vmem>>, vector<256x16xf32>,
    %c0_i32_8 = arith.constant 0 : i32
    %9 = arith.cmpi eq, %arg1, %c0_i32_8 : i32
    %10 = arith.extui %9 : i1 to i32
    %c0_i32_9 = arith.constant 0 : i32
    %11 = arith.cmpi ne, %10, %c0_i32_9 : i32
    scf.if %11 {
      %c0_10 = arith.constant 0 : index
      %c0_11 = arith.constant 0 : index
      %12 = vector.load %arg8[%c0_10, %c0_11] : memref<256x16xf32, #tpu.memory_space<vmem>>, vector<256x16xf32>
      %c0_12 = arith.constant 0 : index
      %c0_13 = arith.constant 0 : index
      %13 = vector.load %arg5[%c0_12, %c0_13] : memref<16x128xf32, #tpu.memory_space<vmem>>, vector<16x128xf32>
      %cst_14 = arith.constant dense<0.000000e+00> : vector<256x128xf32>
      %14 = tpu.matmul %12, %13, %cst_14 {dimension_numbers = #tpu.dot_dimension_numbers<[1], [0], [0], [1], [0, 0, 1, 1], [], []>} : vector<256x16xf32>, vector<16x128xf32>, vector<256x128xf32> -> vector<256x128xf32>
      %c0_15 = arith.constant 0 : index
      %c0_16 = arith.constant 0 : index
      %15 = vector.load %arg6[%c0_15, %c0_16] : memref<1x128xf32, #tpu.memory_space<vmem>>, vector<1x128xf32>
      %16 = vector.broadcast %15 : vector<1x128xf32> to vector<256x128xf32>
      %17 = arith.addf %14, %16 : vector<256x128xf32>
      %c0_17 = arith.constant 0 : index
      %c0_18 = arith.constant 0 : index
      %18 = vector.load %arg7[%c0_17, %c0_18] : memref<256x128xf32, #tpu.memory_space<vmem>>, vector<256x128xf32>
      tpu.vector_store %arg7[%c0_17, %c0_18], %17 {strides = array<i32>} : memref<256x128xf32, #tpu.memory_space<vmem>>, vector<256x128xf32>,
    } else {
    }
    return
  }
  func.func @transform_0(%arg0: i32, %arg1: i32) -> (i32, i32) {
    %c0_i32 = arith.constant 0 : i32
    return %arg0, %arg1 : i32, i32
  }
  func.func @transform_1(%arg0: i32, %arg1: i32) -> (i32, i32) {
    %c0_i32 = arith.constant 0 : i32
    %c0_i32_0 = arith.constant 0 : i32
    return %arg1, %c0_i32 : i32, i32
  }
  func.func @transform_2(%arg0: i32, %arg1: i32) -> (i32, i32) {
    %c0_i32 = arith.constant 0 : i32
    %c0_i32_0 = arith.constant 0 : i32
    return %arg0, %c0_i32 : i32, i32
  }
  func.func @transform_3(%arg0: i32, %arg1: i32) -> (i32, i32) {
    %c0_i32 = arith.constant 0 : i32
    %c0_i32_0 = arith.constant 0 : i32
    %c0_i32_1 = arith.constant 0 : i32
    return %c0_i32, %c0_i32_0 : i32, i32
  }
  func.func @transform_4(%arg0: i32, %arg1: i32) -> (i32, i32) {
    %c0_i32 = arith.constant 0 : i32
    %c0_i32_0 = arith.constant 0 : i32
    %c0_i32_1 = arith.constant 0 : i32
    return %c0_i32, %c0_i32_0 : i32, i32
  }
  func.func @transform_5(%arg0: i32, %arg1: i32) -> (i32, i32) {
    %c0_i32 = arith.constant 0 : i32
    %c0_i32_0 = arith.constant 0 : i32
    return %arg0, %c0_i32 : i32, i32
  }
}

</mosaic_0001>

<llo_original>
// kernel: tpu_custom_call.1
$region0: #{tpu_custom_call.1}
  #allocation0 [shape = 'u32[]', space=smem, size = 0x4, offset = 0x4, fixed_abs, tag = 'smem constant byte address 0x4 - core index']
  #allocation1 [shape = 'u32[144,128]{1,0:T(1,128)}', space=vmem, size = 0x12000, scoped, tag = 'internal scratch']
  #allocation2 [shape = 'f32[256,16]{1,0:T(8,128)}', space=vmem, size = 0x20000, scoped, tag = 'scratch operand']
  %s0 = inlined_call_operand.vmem [shape: f32[256,256], index: 0, kind: input, shape index: {}]
  %s1 = inlined_call_operand.vmem [shape: f32[256,16], index: 1, kind: input, shape index: {}]
  %s2 = inlined_call_operand.vmem [shape: f32[256,16], index: 2, kind: input, shape index: {}]
  %s3 = inlined_call_operand.vmem [shape: f32[16,128], index: 3, kind: input, shape index: {}]
  %s4 = inlined_call_operand.vmem [shape: f32[1,128], index: 4, kind: input, shape index: {}]
  %s5 = inlined_call_operand.hbm [shape: f32[256,128], index: 5, kind: output, shape index: {}]
  %s6 = sld [smem:[#allocation0]]
  $region38: #{tpu_custom_call.1} parent=0
    _
  %s8 = ssub.s32 1, %s6
  %s9 = scalar_select 0, %s8, %s6
  $region1: #{tpu_custom_call.1} parent=0
    #allocation3 [shape = 'u8[131072]{0}', space=vmem, size = 0x20000, scoped, tag = 'output window, operand 0, single buffered']
    #allocation4 [shape = 's32[1]{0}', space=sflag, size = 0x4, scoped, tag = 'scoped memory for tpu_custom_call.1']
    %10 = vsyncpa [#allocation4], 0
    // Predicated region
    $region2: #{tpu_custom_call.1} parent=1 // pred_check
      _
    $region3: #{tpu_custom_call.1} parent=1 // pred_check_branch
      %12 = sbr.rel (0) target = $region5
    $region4: #{tpu_custom_call.1} parent=1 // pred_region
      _
    $region5: #{tpu_custom_call.1} parent=1 // pred_fallthru
      _
    // Predicated region
    $region6: #{tpu_custom_call.1} parent=1 // pred_check
      _
    $region7: #{tpu_custom_call.1} parent=1 // pred_check_branch
      %14 = sbr.rel (0) target = $region9
    $region8: #{tpu_custom_call.1} parent=1 // pred_region
      _
    $region9: #{tpu_custom_call.1} parent=1 // pred_fallthru
      _
    // Predicated region
    $region10: #{tpu_custom_call.1} parent=1 // pred_check
      _
    $region11: #{tpu_custom_call.1} parent=1 // pred_check_branch
      %16 = sbr.rel (0) target = $region13
    $region12: #{tpu_custom_call.1} parent=1 // pred_region
      _
    $region13: #{tpu_custom_call.1} parent=1 // pred_fallthru
      _
    // Predicated region
    $region14: #{tpu_custom_call.1} parent=1 // pred_check
      _
    $region15: #{tpu_custom_call.1} parent=1 // pred_check_branch
      %18 = sbr.rel (0) target = $region17
    $region16: #{tpu_custom_call.1} parent=1 // pred_region
      _
    $region17: #{tpu_custom_call.1} parent=1 // pred_fallthru
      _
    // Predicated region
    $region18: #{tpu_custom_call.1} parent=1 // pred_check
      _
    $region19: #{tpu_custom_call.1} parent=1 // pred_check_branch
      %20 = sbr.rel (0) target = $region21
    $region20: #{tpu_custom_call.1} parent=1 // pred_region
      _
    $region21: #{tpu_custom_call.1} parent=1 // pred_fallthru
      _
    %p21 = scmp.eq.s32.totalorder 0, 0
    // Predicated region
    $region22: #{tpu_custom_call.1} parent=1 // pred_check
      %p22 = pneg %p21
    $region23: #{tpu_custom_call.1} parent=1 // pred_check_branch
      %24 = sbr.rel (%p22) target = $region25
    $region24: #{tpu_custom_call.1} parent=1 // pred_region
      %v25 = vld [vmem:[%s2] sm:$0xff]
      %v26 = vld [vmem:[%s2 + $0x8] sm:$0xff]
      %v27 = vld [vmem:[%s2 + $0x10] sm:$0xff]
      %v28 = vld [vmem:[%s2 + $0x18] sm:$0xff]
      %v29 = vld [vmem:[%s2 + $0x20] sm:$0xff]
      %v30 = vld [vmem:[%s2 + $0x28] sm:$0xff]
      %v31 = vld [vmem:[%s2 + $0x30] sm:$0xff]
      %v32 = vld [vmem:[%s2 + $0x38] sm:$0xff]
      %v33 = vld [vmem:[%s2 + $0x40] sm:$0xff]
      %v34 = vld [vmem:[%s2 + $0x48] sm:$0xff]
      %v35 = vld [vmem:[%s2 + $0x50] sm:$0xff]
      %v36 = vld [vmem:[%s2 + $0x58] sm:$0xff]
      %v37 = vld [vmem:[%s2 + $0x60] sm:$0xff]
      %v38 = vld [vmem:[%s2 + $0x68] sm:$0xff]
      %v39 = vld [vmem:[%s2 + $0x70] sm:$0xff]
      %v40 = vld [vmem:[%s2 + $0x78] sm:$0xff]
      %v41 = vld [vmem:[%s2 + $0x80] sm:$0xff]
      %v42 = vld [vmem:[%s2 + $0x88] sm:$0xff]
      %v43 = vld [vmem:[%s2 + $0x90] sm:$0xff]
      %v44 = vld [vmem:[%s2 + $0x98] sm:$0xff]
      %v45 = vld [vmem:[%s2 + $0xa0] sm:$0xff]
      %v46 = vld [vmem:[%s2 + $0xa8] sm:$0xff]
      %v47 = vld [vmem:[%s2 + $0xb0] sm:$0xff]
      %v48 = vld [vmem:[%s2 + $0xb8] sm:$0xff]
      %v49 = vld [vmem:[%s2 + $0xc0] sm:$0xff]
      %v50 = vld [vmem:[%s2 + $0xc8] sm:$0xff]
      %v51 = vld [vmem:[%s2 + $0xd0] sm:$0xff]
      %v52 = vld [vmem:[%s2 + $0xd8] sm:$0xff]
      %v53 = vld [vmem:[%s2 + $0xe0] sm:$0xff]
      %v54 = vld [vmem:[%s2 + $0xe8] sm:$0xff]
      %v55 = vld [vmem:[%s2 + $0xf0] sm:$0xff]
      %v56 = vld [vmem:[%s2 + $0xf8] sm:$0xff]
      %vm57 = vcmask 130048
      %58 = vst.msk [vmem:[#allocation2] sm:$0xff] %vm57, %v25
      %59 = vst.msk [vmem:[#allocation2 + $0x8] sm:$0xff] %vm57, %v26
      %60 = vst.msk [vmem:[#allocation2 + $0x10] sm:$0xff] %vm57, %v27
      %61 = vst.msk [vmem:[#allocation2 + $0x18] sm:$0xff] %vm57, %v28
      %62 = vst.msk [vmem:[#allocation2 + $0x20] sm:$0xff] %vm57, %v29
      %63 = vst.msk [vmem:[#allocation2 + $0x28] sm:$0xff] %vm57, %v30
      %64 = vst.msk [vmem:[#allocation2 + $0x30] sm:$0xff] %vm57, %v31
      %65 = vst.msk [vmem:[#allocation2 + $0x38] sm:$0xff] %vm57, %v32
      %66 = vst.msk [vmem:[#allocation2 + $0x40] sm:$0xff] %vm57, %v33
      %67 = vst.msk [vmem:[#allocation2 + $0x48] sm:$0xff] %vm57, %v34
      %68 = vst.msk [vmem:[#allocation2 + $0x50] sm:$0xff] %vm57, %v35
      %69 = vst.msk [vmem:[#allocation2 + $0x58] sm:$0xff] %vm57, %v36
      %70 = vst.msk [vmem:[#allocation2 + $0x60] sm:$0xff] %vm57, %v37
      %71 = vst.msk [vmem:[#allocation2 + $0x68] sm:$0xff] %vm57, %v38
      %72 = vst.msk [vmem:[#allocation2 + $0x70] sm:$0xff] %vm57, %v39
      %73 = vst.msk [vmem:[#allocation2 + $0x78] sm:$0xff] %vm57, %v40
      %74 = vst.msk [vmem:[#allocation2 + $0x80] sm:$0xff] %vm57, %v41
      %75 = vst.msk [vmem:[#allocation2 + $0x88] sm:$0xff] %vm57, %v42
      %76 = vst.msk [vmem:[#allocation2 + $0x90] sm:$0xff] %vm57, %v43
      %77 = vst.msk [vmem:[#allocation2 + $0x98] sm:$0xff] %vm57, %v44
      %78 = vst.msk [vmem:[#allocation2 + $0xa0] sm:$0xff] %vm57, %v45
      %79 = vst.msk [vmem:[#allocation2 + $0xa8] sm:$0xff] %vm57, %v46
      %80 = vst.msk [vmem:[#allocation2 + $0xb0] sm:$0xff] %vm57, %v47
      %81 = vst.msk [vmem:[#allocation2 + $0xb8] sm:$0xff] %vm57, %v48
      %82 = vst.msk [vmem:[#allocation2 + $0xc0] sm:$0xff] %vm57, %v49
      %83 = vst.msk [vmem:[#allocation2 + $0xc8] sm:$0xff] %vm57, %v50
      %84 = vst.msk [vmem:[#allocation2 + $0xd0] sm:$0xff] %vm57, %v51
      %85 = vst.msk [vmem:[#allocation2 + $0xd8] sm:$0xff] %vm57, %v52
      %86 = vst.msk [vmem:[#allocation2 + $0xe0] sm:$0xff] %vm57, %v53
      %87 = vst.msk [vmem:[#allocation2 + $0xe8] sm:$0xff] %vm57, %v54
      %88 = vst.msk [vmem:[#allocation2 + $0xf0] sm:$0xff] %vm57, %v55
      %89 = vst.msk [vmem:[#allocation2 + $0xf8] sm:$0xff] %vm57, %v56
    $region25: #{tpu_custom_call.1} parent=1 // pred_fallthru
      _
    %v90 = vld [vmem:[#allocation2] sm:$0xff]
    %v91 = vld [vmem:[#allocation2 + $0x8] sm:$0xff]
    %v92 = vld [vmem:[#allocation2 + $0x10] sm:$0xff]
    %v93 = vld [vmem:[#allocation2 + $0x18] sm:$0xff]
    %v94 = vld [vmem:[#allocation2 + $0x20] sm:$0xff]
    %v95 = vld [vmem:[#allocation2 + $0x28] sm:$0xff]
    %v96 = vld [vmem:[#allocation2 + $0x30] sm:$0xff]
    %v97 = vld [vmem:[#allocation2 + $0x38] sm:$0xff]
    %v98 = vld [vmem:[#allocation2 + $0x40] sm:$0xff]
    %v99 = vld [vmem:[#allocation2 + $0x48] sm:$0xff]
    %v100 = vld [vmem:[#allocation2 + $0x50] sm:$0xff]
    %v101 = vld [vmem:[#allocation2 + $0x58] sm:$0xff]
    %v102 = vld [vmem:[#allocation2 + $0x60] sm:$0xff]
    %v103 = vld [vmem:[#allocation2 + $0x68] sm:$0xff]
    %v104 = vld [vmem:[#allocation2 + $0x70] sm:$0xff]
    %v105 = vld [vmem:[#allocation2 + $0x78] sm:$0xff]
    %v106 = vld [vmem:[#allocation2 + $0x80] sm:$0xff]
    %v107 = vld [vmem:[#allocation2 + $0x88] sm:$0xff]
    %v108 = vld [vmem:[#allocation2 + $0x90] sm:$0xff]
    %v109 = vld [vmem:[#allocation2 + $0x98] sm:$0xff]
    %v110 = vld [vmem:[#allocation2 + $0xa0] sm:$0xff]
    %v111 = vld [vmem:[#allocation2 + $0xa8] sm:$0xff]
    %v112 = vld [vmem:[#allocation2 + $0xb0] sm:$0xff]
    %v113 = vld [vmem:[#allocation2 + $0xb8] sm:$0xff]
    %v114 = vld [vmem:[#allocation2 + $0xc0] sm:$0xff]
    %v115 = vld [vmem:[#allocation2 + $0xc8] sm:$0xff]
    %v116 = vld [vmem:[#allocation2 + $0xd0] sm:$0xff]
    %v117 = vld [vmem:[#allocation2 + $0xd8] sm:$0xff]
    %v118 = vld [vmem:[#allocation2 + $0xe0] sm:$0xff]
    %v119 = vld [vmem:[#allocation2 + $0xe8] sm:$0xff]
    %v120 = vld [vmem:[#allocation2 + $0xf0] sm:$0xff]
    %v121 = vld [vmem:[#allocation2 + $0xf8] sm:$0xff]
    %v122 = vld [vmem:[%s0] sm:$0xff]
    %v123 = vld [vmem:[%s0 + $0x8] sm:$0xff]
    %v124 = vld [vmem:[%s0 + $0x10] sm:$0xff]
    %v125 = vld [vmem:[%s0 + $0x18] sm:$0xff]
    %v126 = vld [vmem:[%s0 + $0x20] sm:$0xff]
    %v127 = vld [vmem:[%s0 + $0x28] sm:$0xff]
    %v128 = vld [vmem:[%s0 + $0x30] sm:$0xff]
    %v129 = vld [vmem:[%s0 + $0x38] sm:$0xff]
    %v130 = vld [vmem:[%s0 + $0x40] sm:$0xff]
    %v131 = vld [vmem:[%s0 + $0x48] sm:$0xff]
    %v132 = vld [vmem:[%s0 + $0x50] sm:$0xff]
    %v133 = vld [vmem:[%s0 + $0x58] sm:$0xff]
    %v134 = vld [vmem:[%s0 + $0x60] sm:$0xff]
    %v135 = vld [vmem:[%s0 + $0x68] sm:$0xff]
    %v136 = vld [vmem:[%s0 + $0x70] sm:$0xff]
    %v137 = vld [vmem:[%s0 + $0x78] sm:$0xff]
    %v138 = vld [vmem:[%s0 + $0x80] sm:$0xff]
    %v139 = vld [vmem:[%s0 + $0x88] sm:$0xff]
    %v140 = vld [vmem:[%s0 + $0x90] sm:$0xff]
    %v141 = vld [vmem:[%s0 + $0x98] sm:$0xff]
    %v142 = vld [vmem:[%s0 + $0xa0] sm:$0xff]
    %v143 = vld [vmem:[%s0 + $0xa8] sm:$0xff]
    %v144 = vld [vmem:[%s0 + $0xb0] sm:$0xff]
    %v145 = vld [vmem:[%s0 + $0xb8] sm:$0xff]
    %v146 = vld [vmem:[%s0 + $0xc0] sm:$0xff]
    %v147 = vld [vmem:[%s0 + $0xc8] sm:$0xff]
    %v148 = vld [vmem:[%s0 + $0xd0] sm:$0xff]
    %v149 = vld [vmem:[%s0 + $0xd8] sm:$0xff]
    %v150 = vld [vmem:[%s0 + $0xe0] sm:$0xff]
    %v151 = vld [vmem:[%s0 + $0xe8] sm:$0xff]
    %v152 = vld [vmem:[%s0 + $0xf0] sm:$0xff]
    %v153 = vld [vmem:[%s0 + $0xf8] sm:$0xff]
    %v154 = vld [vmem:[%s0 + $0x100] sm:$0xff]
    %v155 = vld [vmem:[%s0 + $0x108] sm:$0xff]
    %v156 = vld [vmem:[%s0 + $0x110] sm:$0xff]
    %v157 = vld [vmem:[%s0 + $0x118] sm:$0xff]
    %v158 = vld [vmem:[%s0 + $0x120] sm:$0xff]
    %v159 = vld [vmem:[%s0 + $0x128] sm:$0xff]
    %v160 = vld [vmem:[%s0 + $0x130] sm:$0xff]
    %v161 = vld [vmem:[%s0 + $0x138] sm:$0xff]
    %v162 = vld [vmem:[%s0 + $0x140] sm:$0xff]
    %v163 = vld [vmem:[%s0 + $0x148] sm:$0xff]
    %v164 = vld [vmem:[%s0 + $0x150] sm:$0xff]
    %v165 = vld [vmem:[%s0 + $0x158] sm:$0xff]
    %v166 = vld [vmem:[%s0 + $0x160] sm:$0xff]
    %v167 = vld [vmem:[%s0 + $0x168] sm:$0xff]
    %v168 = vld [vmem:[%s0 + $0x170] sm:$0xff]
    %v169 = vld [vmem:[%s0 + $0x178] sm:$0xff]
    %v170 = vld [vmem:[%s0 + $0x180] sm:$0xff]
    %v171 = vld [vmem:[%s0 + $0x188] sm:$0xff]
    %v172 = vld [vmem:[%s0 + $0x190] sm:$0xff]
    %v173 = vld [vmem:[%s0 + $0x198] sm:$0xff]
    %v174 = vld [vmem:[%s0 + $0x1a0] sm:$0xff]
    %v175 = vld [vmem:[%s0 + $0x1a8] sm:$0xff]
    %v176 = vld [vmem:[%s0 + $0x1b0] sm:$0xff]
    %v177 = vld [vmem:[%s0 + $0x1b8] sm:$0xff]
    %v178 = vld [vmem:[%s0 + $0x1c0] sm:$0xff]
    %v179 = vld [vmem:[%s0 + $0x1c8] sm:$0xff]
    %v180 = vld [vmem:[%s0 + $0x1d0] sm:$0xff]
    %v181 = vld [vmem:[%s0 + $0x1d8] sm:$0xff]
    %v182 = vld [vmem:[%s0 + $0x1e0] sm:$0xff]
    %v183 = vld [vmem:[%s0 + $0x1e8] sm:$0xff]
    %v184 = vld [vmem:[%s0 + $0x1f0] sm:$0xff]
    %v185 = vld [vmem:[%s0 + $0x1f8] sm:$0xff]
    %v186 = vld [vmem:[%s1] sm:$0xff]
    %v187 = vld [vmem:[%s1 + $0x8] sm:$0xff]
    %v188 = vld [vmem:[%s1 + $0x10] sm:$0xff]
    %v189 = vld [vmem:[%s1 + $0x18] sm:$0xff]
    %v190 = vld [vmem:[%s1 + $0x20] sm:$0xff]
    %v191 = vld [vmem:[%s1 + $0x28] sm:$0xff]
    %v192 = vld [vmem:[%s1 + $0x30] sm:$0xff]
    %v193 = vld [vmem:[%s1 + $0x38] sm:$0xff]
    %v194 = vld [vmem:[%s1 + $0x40] sm:$0xff]
    %v195 = vld [vmem:[%s1 + $0x48] sm:$0xff]
    %v196 = vld [vmem:[%s1 + $0x50] sm:$0xff]
    %v197 = vld [vmem:[%s1 + $0x58] sm:$0xff]
    %v198 = vld [vmem:[%s1 + $0x60] sm:$0xff]
    %v199 = vld [vmem:[%s1 + $0x68] sm:$0xff]
    %v200 = vld [vmem:[%s1 + $0x70] sm:$0xff]
    %v201 = vld [vmem:[%s1 + $0x78] sm:$0xff]
    %v202 = vld [vmem:[%s1 + $0x80] sm:$0xff]
    %v203 = vld [vmem:[%s1 + $0x88] sm:$0xff]
    %v204 = vld [vmem:[%s1 + $0x90] sm:$0xff]
    %v205 = vld [vmem:[%s1 + $0x98] sm:$0xff]
    %v206 = vld [vmem:[%s1 + $0xa0] sm:$0xff]
    %v207 = vld [vmem:[%s1 + $0xa8] sm:$0xff]
    %v208 = vld [vmem:[%s1 + $0xb0] sm:$0xff]
    %v209 = vld [vmem:[%s1 + $0xb8] sm:$0xff]
    %v210 = vld [vmem:[%s1 + $0xc0] sm:$0xff]
    %v211 = vld [vmem:[%s1 + $0xc8] sm:$0xff]
    %v212 = vld [vmem:[%s1 + $0xd0] sm:$0xff]
    %v213 = vld [vmem:[%s1 + $0xd8] sm:$0xff]
    %v214 = vld [vmem:[%s1 + $0xe0] sm:$0xff]
    %v215 = vld [vmem:[%s1 + $0xe8] sm:$0xff]
    %v216 = vld [vmem:[%s1 + $0xf0] sm:$0xff]
    %v217 = vld [vmem:[%s1 + $0xf8] sm:$0xff]
    %218 = vmatprep.subr.mxu0 0.0
    %219 = vmatpush1.msra.mxu0 %v201
    %220 = vmatprep.subr.mxu0 0.0
    %221 = vmatpush1.msra.mxu0 %v200
    %222 = vmatprep.subr.mxu0 0.0
    %223 = vmatpush1.msra.mxu0 %v199
    %224 = vmatprep.subr.mxu0 0.0
    %225 = vmatpush1.msra.mxu0 %v198
    %226 = vmatprep.subr.mxu0 0.0
    %227 = vmatpush1.msra.mxu0 %v197
    %228 = vmatprep.subr.mxu0 0.0
    %229 = vmatpush1.msra.mxu0 %v196
    %230 = vmatprep.subr.mxu0 0.0
    %231 = vmatpush1.msra.mxu0 %v195
    %232 = vmatprep.subr.mxu0 0.0
    %233 = vmatpush1.msra.mxu0 %v194
    %234 = vmatprep.subr.mxu0 0.0
    %235 = vmatpush1.msra.mxu0 %v193
    %236 = vmatprep.subr.mxu0 0.0
    %237 = vmatpush1.msra.mxu0 %v192
    %238 = vmatprep.subr.mxu0 0.0
    %239 = vmatpush1.msra.mxu0 %v191
    %240 = vmatprep.subr.mxu0 0.0
    %241 = vmatpush1.msra.mxu0 %v190
    %242 = vmatprep.subr.mxu0 0.0
    %243 = vmatpush1.msra.mxu0 %v189
    %244 = vmatprep.subr.mxu0 0.0
    %245 = vmatpush1.msra.mxu0 %v188
    %246 = vmatprep.subr.mxu0 0.0
    %247 = vmatpush1.msra.mxu0 %v187
    %248 = vmatprep.subr.mxu0 0.0
    %249 = vmatpush1.msra.mxu0 %v186
    %250 = vmatprep.subr.mxu0 0.0
    %251 = vmatpush2.msra.mxu0 %v217
    %252 = vmatprep.subr.mxu0 0.0
    %253 = vmatpush2.msra.mxu0 %v216
    %254 = vmatprep.subr.mxu0 0.0
    %255 = vmatpush2.msra.mxu0 %v215
    %256 = vmatprep.subr.mxu0 0.0
    %257 = vmatpush2.msra.mxu0 %v214
    %258 = vmatprep.subr.mxu0 0.0
    %259 = vmatpush2.msra.mxu0 %v213
    %260 = vmatprep.subr.mxu0 0.0
    %261 = vmatpush2.msra.mxu0 %v212
    %262 = vmatprep.subr.mxu0 0.0
    %263 = vmatpush2.msra.mxu0 %v211
    %264 = vmatprep.subr.mxu0 0.0
    %265 = vmatpush2.msra.mxu0 %v210
    %266 = vmatprep.subr.mxu0 0.0
    %267 = vmatpush2.msra.mxu0 %v209
    %268 = vmatprep.subr.mxu0 0.0
    %269 = vmatpush2.msra.mxu0 %v208
    %270 = vmatprep.subr.mxu0 0.0
    %271 = vmatpush2.msra.mxu0 %v207
    %272 = vmatprep.subr.mxu0 0.0
    %273 = vmatpush2.msra.mxu0 %v206
    %274 = vmatprep.subr.mxu0 0.0
    %275 = vmatpush2.msra.mxu0 %v205
    %276 = vmatprep.subr.mxu0 0.0
    %277 = vmatpush2.msra.mxu0 %v204
    %278 = vmatprep.subr.mxu0 0.0
    %279 = vmatpush2.msra.mxu0 %v203
    %280 = vmatprep.subr.mxu0 0.0
    %281 = vmatpush2.msra.mxu0 %v202
    %282 = vmatprep.mubr.f32.mxu0 %v123
    %283 = vmatmul.mubr.f32.gmra.mxu0 %v122
    %v284 = vpop.f32.mrf.mxu0
    %v285 = vadd.f32 0.0, %v284
    %v286 = vpop.f32.mrf.mxu0
    %287 = vmatprep.mubr.f32.mxu0 %v125
    %288 = vmatmul.mubr.f32.gmra.mxu0 %v124
    %v289 = vpop.f32.mrf.mxu0
    %v290 = vadd.f32 0.0, %v289
    %v291 = vpop.f32.mrf.mxu0
    %292 = vmatprep.mubr.f32.mxu0 %v127
    %293 = vmatmul.mubr.f32.gmra.mxu0 %v126
    %v294 = vpop.f32.mrf.mxu0
    %v295 = vadd.f32 0.0, %v294
    %v296 = vpop.f32.mrf.mxu0
    %297 = vmatprep.mubr.f32.mxu0 %v129
    %298 = vmatmul.mubr.f32.gmra.mxu0 %v128
    %v299 = vpop.f32.mrf.mxu0
    %v300 = vadd.f32 0.0, %v299
    %v301 = vpop.f32.mrf.mxu0
    %302 = vmatprep.mubr.f32.mxu0 %v131
    %303 = vmatmul.mubr.f32.gmra.mxu0 %v130
    %v304 = vpop.f32.mrf.mxu0
    %v305 = vadd.f32 0.0, %v304
    %v306 = vpop.f32.mrf.mxu0
    %307 = vmatprep.mubr.f32.mxu0 %v133
    %308 = vmatmul.mubr.f32.gmra.mxu0 %v132
    %v309 = vpop.f32.mrf.mxu0
    %v310 = vadd.f32 0.0, %v309
    %v311 = vpop.f32.mrf.mxu0
    %312 = vmatprep.mubr.f32.mxu0 %v135
    %313 = vmatmul.mubr.f32.gmra.mxu0 %v134
    %v314 = vpop.f32.mrf.mxu0
    %v315 = vadd.f32 0.0, %v314
    %v316 = vpop.f32.mrf.mxu0
    %317 = vmatprep.mubr.f32.mxu0 %v137
    %318 = vmatmul.mubr.f32.gmra.mxu0 %v136
    %v319 = vpop.f32.mrf.mxu0
    %v320 = vadd.f32 0.0, %v319
    %v321 = vpop.f32.mrf.mxu0
    %322 = vmatprep.mubr.f32.mxu0 %v139
    %323 = vmatmul.mubr.f32.gmra.mxu0 %v138
    %v324 = vpop.f32.mrf.mxu0
    %v325 = vadd.f32 0.0, %v324
    %v326 = vpop.f32.mrf.mxu0
    %327 = vmatprep.mubr.f32.mxu0 %v141
    %328 = vmatmul.mubr.f32.gmra.mxu0 %v140
    %v329 = vpop.f32.mrf.mxu0
    %v330 = vadd.f32 0.0, %v329
    %v331 = vpop.f32.mrf.mxu0
    %332 = vmatprep.mubr.f32.mxu0 %v143
    %333 = vmatmul.mubr.f32.gmra.mxu0 %v142
    %v334 = vpop.f32.mrf.mxu0
    %v335 = vadd.f32 0.0, %v334
    %v336 = vpop.f32.mrf.mxu0
    %337 = vmatprep.mubr.f32.mxu0 %v145
    %338 = vmatmul.mubr.f32.gmra.mxu0 %v144
    %v339 = vpop.f32.mrf.mxu0
    %v340 = vadd.f32 0.0, %v339
    %v341 = vpop.f32.mrf.mxu0
    %342 = vmatprep.mubr.f32.mxu0 %v147
    %343 = vmatmul.mubr.f32.gmra.mxu0 %v146
    %v344 = vpop.f32.mrf.mxu0
    %v345 = vadd.f32 0.0, %v344
    %v346 = vpop.f32.mrf.mxu0
    %347 = vmatprep.mubr.f32.mxu0 %v149
    %348 = vmatmul.mubr.f32.gmra.mxu0 %v148
    %v349 = vpop.f32.mrf.mxu0
    %v350 = vadd.f32 0.0, %v349
    %v351 = vpop.f32.mrf.mxu0
    %352 = vmatprep.mubr.f32.mxu0 %v151
    %353 = vmatmul.mubr.f32.gmra.mxu0 %v150
    %v354 = vpop.f32.mrf.mxu0
    %v355 = vadd.f32 0.0, %v354
    %v356 = vpop.f32.mrf.mxu0
    %357 = vmatprep.mubr.f32.mxu0 %v153
    %358 = vmatmul.mubr.f32.gmra.mxu0 %v152
    %v359 = vpop.f32.mrf.mxu0
    %v360 = vadd.f32 0.0, %v359
    %v361 = vpop.f32.mrf.mxu0
    %362 = vmatprep.mubr.f32.mxu0 %v155
    %363 = vmatmul.mubr.f32.gmra.mxu0 %v154
    %v364 = vpop.f32.mrf.mxu0
    %v365 = vadd.f32 0.0, %v364
    %v366 = vpop.f32.mrf.mxu0
    %367 = vmatprep.mubr.f32.mxu0 %v157
    %368 = vmatmul.mubr.f32.gmra.mxu0 %v156
    %v369 = vpop.f32.mrf.mxu0
    %v370 = vadd.f32 0.0, %v369
    %v371 = vpop.f32.mrf.mxu0
    %372 = vmatprep.mubr.f32.mxu0 %v159
    %373 = vmatmul.mubr.f32.gmra.mxu0 %v158
    %v374 = vpop.f32.mrf.mxu0
    %v375 = vadd.f32 0.0, %v374
    %v376 = vpop.f32.mrf.mxu0
    %377 = vmatprep.mubr.f32.mxu0 %v161
    %378 = vmatmul.mubr.f32.gmra.mxu0 %v160
    %v379 = vpop.f32.mrf.mxu0
    %v380 = vadd.f32 0.0, %v379
    %v381 = vpop.f32.mrf.mxu0
    %382 = vmatprep.mubr.f32.mxu0 %v163
    %383 = vmatmul.mubr.f32.gmra.mxu0 %v162
    %v384 = vpop.f32.mrf.mxu0
    %v385 = vadd.f32 0.0, %v384
    %v386 = vpop.f32.mrf.mxu0
    %387 = vmatprep.mubr.f32.mxu0 %v165
    %388 = vmatmul.mubr.f32.gmra.mxu0 %v164
    %v389 = vpop.f32.mrf.mxu0
    %v390 = vadd.f32 0.0, %v389
    %v391 = vpop.f32.mrf.mxu0
    %392 = vmatprep.mubr.f32.mxu0 %v167
    %393 = vmatmul.mubr.f32.gmra.mxu0 %v166
    %v394 = vpop.f32.mrf.mxu0
    %v395 = vadd.f32 0.0, %v394
    %v396 = vpop.f32.mrf.mxu0
    %397 = vmatprep.mubr.f32.mxu0 %v169
    %398 = vmatmul.mubr.f32.gmra.mxu0 %v168
    %v399 = vpop.f32.mrf.mxu0
    %v400 = vadd.f32 0.0, %v399
    %v401 = vpop.f32.mrf.mxu0
    %402 = vmatprep.mubr.f32.mxu0 %v171
    %403 = vmatmul.mubr.f32.gmra.mxu0 %v170
    %v404 = vpop.f32.mrf.mxu0
    %v405 = vadd.f32 0.0, %v404
    %v406 = vpop.f32.mrf.mxu0
    %407 = vmatprep.mubr.f32.mxu0 %v173
    %408 = vmatmul.mubr.f32.gmra.mxu0 %v172
    %v409 = vpop.f32.mrf.mxu0
    %v410 = vadd.f32 0.0, %v409
    %v411 = vpop.f32.mrf.mxu0
    %412 = vmatprep.mubr.f32.mxu0 %v175
    %413 = vmatmul.mubr.f32.gmra.mxu0 %v174
    %v414 = vpop.f32.mrf.mxu0
    %v415 = vadd.f32 0.0, %v414
    %v416 = vpop.f32.mrf.mxu0
    %417 = vmatprep.mubr.f32.mxu0 %v177
    %418 = vmatmul.mubr.f32.gmra.mxu0 %v176
    %v419 = vpop.f32.mrf.mxu0
    %v420 = vadd.f32 0.0, %v419
    %v421 = vpop.f32.mrf.mxu0
    %422 = vmatprep.mubr.f32.mxu0 %v179
    %423 = vmatmul.mubr.f32.gmra.mxu0 %v178
    %v424 = vpop.f32.mrf.mxu0
    %v425 = vadd.f32 0.0, %v424
    %v426 = vpop.f32.mrf.mxu0
    %427 = vmatprep.mubr.f32.mxu0 %v181
    %428 = vmatmul.mubr.f32.gmra.mxu0 %v180
    %v429 = vpop.f32.mrf.mxu0
    %v430 = vadd.f32 0.0, %v429
    %v431 = vpop.f32.mrf.mxu0
    %432 = vmatprep.mubr.f32.mxu0 %v183
    %433 = vmatmul.mubr.f32.gmra.mxu0 %v182
    %v434 = vpop.f32.mrf.mxu0
    %v435 = vadd.f32 0.0, %v434
    %v436 = vpop.f32.mrf.mxu0
    %437 = vmatprep.mubr.f32.mxu0 %v185
    %438 = vmatmul.mubr.f32.gmra.mxu0 %v184
    %v439 = vpop.f32.mrf.mxu0
    %v440 = vadd.f32 0.0, %v439
    %v441 = vpop.f32.mrf.mxu0
    %442 = vdwg.mxu0
    %v443 = vadd.f32 %v90, %v285
    %v444 = vadd.f32 %v91, %v290
    %v445 = vadd.f32 %v92, %v295
    %v446 = vadd.f32 %v93, %v300
    %v447 = vadd.f32 %v94, %v305
    %v448 = vadd.f32 %v95, %v310
    %v449 = vadd.f32 %v96, %v315
    %v450 = vadd.f32 %v97, %v320
    %v451 = vadd.f32 %v98, %v325
    %v452 = vadd.f32 %v99, %v330
    %v453 = vadd.f32 %v100, %v335
    %v454 = vadd.f32 %v101, %v340
    %v455 = vadd.f32 %v102, %v345
    %v456 = vadd.f32 %v103, %v350
    %v457 = vadd.f32 %v104, %v355
    %v458 = vadd.f32 %v105, %v360
    %v459 = vadd.f32 %v106, %v365
    %v460 = vadd.f32 %v107, %v370
    %v461 = vadd.f32 %v108, %v375
    %v462 = vadd.f32 %v109, %v380
    %v463 = vadd.f32 %v110, %v385
    %v464 = vadd.f32 %v111, %v390
    %v465 = vadd.f32 %v112, %v395
    %v466 = vadd.f32 %v113, %v400
    %v467 = vadd.f32 %v114, %v405
    %v468 = vadd.f32 %v115, %v410
    %v469 = vadd.f32 %v116, %v415
    %v470 = vadd.f32 %v117, %v420
    %v471 = vadd.f32 %v118, %v425
    %v472 = vadd.f32 %v119, %v430
    %v473 = vadd.f32 %v120, %v435
    %v474 = vadd.f32 %v121, %v440
    %vm475 = vcmask 130048
    %476 = vst.msk [vmem:[#allocation2] sm:$0xff] %vm475, %v443
    %477 = vst.msk [vmem:[#allocation2 + $0x8] sm:$0xff] %vm475, %v444
    %478 = vst.msk [vmem:[#allocation2 + $0x10] sm:$0xff] %vm475, %v445
    %479 = vst.msk [vmem:[#allocation2 + $0x18] sm:$0xff] %vm475, %v446
    %480 = vst.msk [vmem:[#allocation2 + $0x20] sm:$0xff] %vm475, %v447
    %481 = vst.msk [vmem:[#allocation2 + $0x28] sm:$0xff] %vm475, %v448
    %482 = vst.msk [vmem:[#allocation2 + $0x30] sm:$0xff] %vm475, %v449
    %483 = vst.msk [vmem:[#allocation2 + $0x38] sm:$0xff] %vm475, %v450
    %484 = vst.msk [vmem:[#allocation2 + $0x40] sm:$0xff] %vm475, %v451
    %485 = vst.msk [vmem:[#allocation2 + $0x48] sm:$0xff] %vm475, %v452
    %486 = vst.msk [vmem:[#allocation2 + $0x50] sm:$0xff] %vm475, %v453
    %487 = vst.msk [vmem:[#allocation2 + $0x58] sm:$0xff] %vm475, %v454
    %488 = vst.msk [vmem:[#allocation2 + $0x60] sm:$0xff] %vm475, %v455
    %489 = vst.msk [vmem:[#allocation2 + $0x68] sm:$0xff] %vm475, %v456
    %490 = vst.msk [vmem:[#allocation2 + $0x70] sm:$0xff] %vm475, %v457
    %491 = vst.msk [vmem:[#allocation2 + $0x78] sm:$0xff] %vm475, %v458
    %492 = vst.msk [vmem:[#allocation2 + $0x80] sm:$0xff] %vm475, %v459
    %493 = vst.msk [vmem:[#allocation2 + $0x88] sm:$0xff] %vm475, %v460
    %494 = vst.msk [vmem:[#allocation2 + $0x90] sm:$0xff] %vm475, %v461
    %495 = vst.msk [vmem:[#allocation2 + $0x98] sm:$0xff] %vm475, %v462
    %496 = vst.msk [vmem:[#allocation2 + $0xa0] sm:$0xff] %vm475, %v463
    %497 = vst.msk [vmem:[#allocation2 + $0xa8] sm:$0xff] %vm475, %v464
    %498 = vst.msk [vmem:[#allocation2 + $0xb0] sm:$0xff] %vm475, %v465
    %499 = vst.msk [vmem:[#allocation2 + $0xb8] sm:$0xff] %vm475, %v466
    %500 = vst.msk [vmem:[#allocation2 + $0xc0] sm:$0xff] %vm475, %v467
    %501 = vst.msk [vmem:[#allocation2 + $0xc8] sm:$0xff] %vm475, %v468
    %502 = vst.msk [vmem:[#allocation2 + $0xd0] sm:$0xff] %vm475, %v469
    %503 = vst.msk [vmem:[#allocation2 + $0xd8] sm:$0xff] %vm475, %v470
    %504 = vst.msk [vmem:[#allocation2 + $0xe0] sm:$0xff] %vm475, %v471
    %505 = vst.msk [vmem:[#allocation2 + $0xe8] sm:$0xff] %vm475, %v472
    %506 = vst.msk [vmem:[#allocation2 + $0xf0] sm:$0xff] %vm475, %v473
    %507 = vst.msk [vmem:[#allocation2 + $0xf8] sm:$0xff] %vm475, %v474
    // Predicated region
    $region26: #{tpu_custom_call.1} parent=1 // pred_check
      %p508 = pneg %p21
    $region27: #{tpu_custom_call.1} parent=1 // pred_check_branch
      %510 = sbr.rel (%p508) target = $region29
    $region28: #{tpu_custom_call.1} parent=1 // pred_region
      %v511 = vld [vmem:[#allocation2] sm:$0xff]
      %v512 = vld [vmem:[#allocation2 + $0x8] sm:$0xff]
      %v513 = vld [vmem:[#allocation2 + $0x10] sm:$0xff]
      %v514 = vld [vmem:[#allocation2 + $0x18] sm:$0xff]
      %v515 = vld [vmem:[#allocation2 + $0x20] sm:$0xff]
      %v516 = vld [vmem:[#allocation2 + $0x28] sm:$0xff]
      %v517 = vld [vmem:[#allocation2 + $0x30] sm:$0xff]
      %v518 = vld [vmem:[#allocation2 + $0x38] sm:$0xff]
      %v519 = vld [vmem:[#allocation2 + $0x40] sm:$0xff]
      %v520 = vld [vmem:[#allocation2 + $0x48] sm:$0xff]
      %v521 = vld [vmem:[#allocation2 + $0x50] sm:$0xff]
      %v522 = vld [vmem:[#allocation2 + $0x58] sm:$0xff]
      %v523 = vld [vmem:[#allocation2 + $0x60] sm:$0xff]
      %v524 = vld [vmem:[#allocation2 + $0x68] sm:$0xff]
      %v525 = vld [vmem:[#allocation2 + $0x70] sm:$0xff]
      %v526 = vld [vmem:[#allocation2 + $0x78] sm:$0xff]
      %v527 = vld [vmem:[#allocation2 + $0x80] sm:$0xff]
      %v528 = vld [vmem:[#allocation2 + $0x88] sm:$0xff]
      %v529 = vld [vmem:[#allocation2 + $0x90] sm:$0xff]
      %v530 = vld [vmem:[#allocation2 + $0x98] sm:$0xff]
      %v531 = vld [vmem:[#allocation2 + $0xa0] sm:$0xff]
      %v532 = vld [vmem:[#allocation2 + $0xa8] sm:$0xff]
      %v533 = vld [vmem:[#allocation2 + $0xb0] sm:$0xff]
      %v534 = vld [vmem:[#allocation2 + $0xb8] sm:$0xff]
      %v535 = vld [vmem:[#allocation2 + $0xc0] sm:$0xff]
      %v536 = vld [vmem:[#allocation2 + $0xc8] sm:$0xff]
      %v537 = vld [vmem:[#allocation2 + $0xd0] sm:$0xff]
      %v538 = vld [vmem:[#allocation2 + $0xd8] sm:$0xff]
      %v539 = vld [vmem:[#allocation2 + $0xe0] sm:$0xff]
      %v540 = vld [vmem:[#allocation2 + $0xe8] sm:$0xff]
      %v541 = vld [vmem:[#allocation2 + $0xf0] sm:$0xff]
      %v542 = vld [vmem:[#allocation2 + $0xf8] sm:$0xff]
      %v543 = vld [vmem:[%s3] sm:$0xff]
      %v544 = vld [vmem:[%s3 + $0x8] sm:$0xff]
      %v545 = vld [vmem:[%s4] sm:$0x1]
      %v547 = vlaneseq
      %v548 = vshrl.u32 %v547, 7
      %v549 = vsub.s32 0, %v548
      %v550 = vrot.slane %v545, %v549
      %v553 = vsel %vm475, %v511, 0
      %v556 = vsel %vm475, %v512, 0
      %v559 = vsel %vm475, %v513, 0
      %v562 = vsel %vm475, %v514, 0
      %v565 = vsel %vm475, %v515, 0
      %v568 = vsel %vm475, %v516, 0
      %v571 = vsel %vm475, %v517, 0
      %v574 = vsel %vm475, %v518, 0
      %v577 = vsel %vm475, %v519, 0
      %v580 = vsel %vm475, %v520, 0
      %v583 = vsel %vm475, %v521, 0
      %v586 = vsel %vm475, %v522, 0
      %v589 = vsel %vm475, %v523, 0
      %v592 = vsel %vm475, %v524, 0
      %v595 = vsel %vm475, %v525, 0
      %v598 = vsel %vm475, %v526, 0
      %v601 = vsel %vm475, %v527, 0
      %v604 = vsel %vm475, %v528, 0
      %v607 = vsel %vm475, %v529, 0
      %v610 = vsel %vm475, %v530, 0
      %v613 = vsel %vm475, %v531, 0
      %v616 = vsel %vm475, %v532, 0
      %v619 = vsel %vm475, %v533, 0
      %v622 = vsel %vm475, %v534, 0
      %v625 = vsel %vm475, %v535, 0
      %v628 = vsel %vm475, %v536, 0
      %v631 = vsel %vm475, %v537, 0
      %v634 = vsel %vm475, %v538, 0
      %v637 = vsel %vm475, %v539, 0
      %v640 = vsel %vm475, %v540, 0
      %v643 = vsel %vm475, %v541, 0
      %v646 = vsel %vm475, %v542, 0
      %648 = vmatprep.subr.mxu0 0.0
      %649 = vmatpush1.msra.mxu0 0.0
      %650 = vmatprep.subr.mxu0 0.0
      %651 = vmatpush1.msra.mxu0 0.0
      %652 = vmatprep.subr.mxu0 0.0
      %653 = vmatpush1.msra.mxu0 0.0
      %654 = vmatprep.subr.mxu0 0.0
      %655 = vmatpush1.msra.mxu0 0.0
      %656 = vmatprep.subr.mxu0 0.0
      %657 = vmatpush1.msra.mxu0 0.0
      %658 = vmatprep.subr.mxu0 0.0
      %659 = vmatpush1.msra.mxu0 0.0
      %660 = vmatprep.subr.mxu0 0.0
      %661 = vmatpush1.msra.mxu0 0.0
      %662 = vmatprep.subr.mxu0 0.0
      %663 = vmatpush1.msra.mxu0 0.0
      %664 = vmatprep.subr.mxu0 0.0
      %665 = vmatpush1.msra.mxu0 0.0
      %666 = vmatprep.subr.mxu0 0.0
      %667 = vmatpush1.msra.mxu0 0.0
      %668 = vmatprep.subr.mxu0 0.0
      %669 = vmatpush1.msra.mxu0 0.0
      %670 = vmatprep.subr.mxu0 0.0
      %671 = vmatpush1.msra.mxu0 0.0
      %672 = vmatprep.subr.mxu0 0.0
      %673 = vmatpush1.msra.mxu0 0.0
      %674 = vmatprep.subr.mxu0 0.0
      %675 = vmatpush1.msra.mxu0 0.0
      %676 = vmatprep.subr.mxu0 0.0
      %677 = vmatpush1.msra.mxu0 %v544
      %678 = vmatprep.subr.mxu0 0.0
      %679 = vmatpush1.msra.mxu0 %v543
      %680 = vmatprep.subr.mxu0 0.0
      %681 = vmatpush2.msra.mxu0 0.0
      %682 = vmatprep.subr.mxu0 0.0
      %683 = vmatpush2.msra.mxu0 0.0
      %684 = vmatprep.subr.mxu0 0.0
      %685 = vmatpush2.msra.mxu0 0.0
      %686 = vmatprep.subr.mxu0 0.0
      %687 = vmatpush2.msra.mxu0 0.0
      %688 = vmatprep.subr.mxu0 0.0
      %689 = vmatpush2.msra.mxu0 0.0
      %690 = vmatprep.subr.mxu0 0.0
      %691 = vmatpush2.msra.mxu0 0.0
      %692 = vmatprep.subr.mxu0 0.0
      %693 = vmatpush2.msra.mxu0 0.0
      %694 = vmatprep.subr.mxu0 0.0
      %695 = vmatpush2.msra.mxu0 0.0
      %696 = vmatprep.subr.mxu0 0.0
      %697 = vmatpush2.msra.mxu0 0.0
      %698 = vmatprep.subr.mxu0 0.0
      %699 = vmatpush2.msra.mxu0 0.0
      %700 = vmatprep.subr.mxu0 0.0
      %701 = vmatpush2.msra.mxu0 0.0
      %702 = vmatprep.subr.mxu0 0.0
      %703 = vmatpush2.msra.mxu0 0.0
      %704 = vmatprep.subr.mxu0 0.0
      %705 = vmatpush2.msra.mxu0 0.0
      %706 = vmatprep.subr.mxu0 0.0
      %707 = vmatpush2.msra.mxu0 0.0
      %708 = vmatprep.subr.mxu0 0.0
      %709 = vmatpush2.msra.mxu0 0.0
      %710 = vmatprep.subr.mxu0 0.0
      %711 = vmatpush2.msra.mxu0 0.0
      %712 = vmatprep.mubr.f32.mxu0 0.0
      %713 = vmatmul.mubr.f32.gmra.mxu0 %v553
      %v714 = vpop.f32.mrf.mxu0
      %v715 = vadd.f32 %v550, %v714
      %v716 = vpop.f32.mrf.mxu0
      %717 = vmatprep.mubr.f32.mxu0 0.0
      %718 = vmatmul.mubr.f32.gmra.mxu0 %v556
      %v719 = vpop.f32.mrf.mxu0
      %v720 = vadd.f32 %v550, %v719
      %v721 = vpop.f32.mrf.mxu0
      %722 = vmatprep.mubr.f32.mxu0 0.0
      %723 = vmatmul.mubr.f32.gmra.mxu0 %v559
      %v724 = vpop.f32.mrf.mxu0
      %v725 = vadd.f32 %v550, %v724
      %v726 = vpop.f32.mrf.mxu0
      %727 = vmatprep.mubr.f32.mxu0 0.0
      %728 = vmatmul.mubr.f32.gmra.mxu0 %v562
      %v729 = vpop.f32.mrf.mxu0
      %v730 = vadd.f32 %v550, %v729
      %v731 = vpop.f32.mrf.mxu0
      %732 = vmatprep.mubr.f32.mxu0 0.0
      %733 = vmatmul.mubr.f32.gmra.mxu0 %v565
      %v734 = vpop.f32.mrf.mxu0
      %v735 = vadd.f32 %v550, %v734
      %v736 = vpop.f32.mrf.mxu0
      %737 = vmatprep.mubr.f32.mxu0 0.0
      %738 = vmatmul.mubr.f32.gmra.mxu0 %v568
      %v739 = vpop.f32.mrf.mxu0
      %v740 = vadd.f32 %v550, %v739
      %v741 = vpop.f32.mrf.mxu0
      %742 = vmatprep.mubr.f32.mxu0 0.0
      %743 = vmatmul.mubr.f32.gmra.mxu0 %v571
      %v744 = vpop.f32.mrf.mxu0
      %v745 = vadd.f32 %v550, %v744
      %v746 = vpop.f32.mrf.mxu0
      %747 = vmatprep.mubr.f32.mxu0 0.0
      %748 = vmatmul.mubr.f32.gmra.mxu0 %v574
      %v749 = vpop.f32.mrf.mxu0
      %v750 = vadd.f32 %v550, %v749
      %v751 = vpop.f32.mrf.mxu0
      %752 = vmatprep.mubr.f32.mxu0 0.0
      %753 = vmatmul.mubr.f32.gmra.mxu0 %v577
      %v754 = vpop.f32.mrf.mxu0
      %v755 = vadd.f32 %v550, %v754
      %v756 = vpop.f32.mrf.mxu0
      %757 = vmatprep.mubr.f32.mxu0 0.0
      %758 = vmatmul.mubr.f32.gmra.mxu0 %v580
      %v759 = vpop.f32.mrf.mxu0
      %v760 = vadd.f32 %v550, %v759
      %v761 = vpop.f32.mrf.mxu0
      %762 = vmatprep.mubr.f32.mxu0 0.0
      %763 = vmatmul.mubr.f32.gmra.mxu0 %v583
      %v764 = vpop.f32.mrf.mxu0
      %v765 = vadd.f32 %v550, %v764
      %v766 = vpop.f32.mrf.mxu0
      %767 = vmatprep.mubr.f32.mxu0 0.0
      %768 = vmatmul.mubr.f32.gmra.mxu0 %v586
      %v769 = vpop.f32.mrf.mxu0
      %v770 = vadd.f32 %v550, %v769
      %v771 = vpop.f32.mrf.mxu0
      %772 = vmatprep.mubr.f32.mxu0 0.0
      %773 = vmatmul.mubr.f32.gmra.mxu0 %v589
      %v774 = vpop.f32.mrf.mxu0
      %v775 = vadd.f32 %v550, %v774
      %v776 = vpop.f32.mrf.mxu0
      %777 = vmatprep.mubr.f32.mxu0 0.0
      %778 = vmatmul.mubr.f32.gmra.mxu0 %v592
      %v779 = vpop.f32.mrf.mxu0
      %v780 = vadd.f32 %v550, %v779
      %v781 = vpop.f32.mrf.mxu0
      %782 = vmatprep.mubr.f32.mxu0 0.0
      %783 = vmatmul.mubr.f32.gmra.mxu0 %v595
      %v784 = vpop.f32.mrf.mxu0
      %v785 = vadd.f32 %v550, %v784
      %v786 = vpop.f32.mrf.mxu0
      %787 = vmatprep.mubr.f32.mxu0 0.0
      %788 = vmatmul.mubr.f32.gmra.mxu0 %v598
      %v789 = vpop.f32.mrf.mxu0
      %v790 = vadd.f32 %v550, %v789
      %v791 = vpop.f32.mrf.mxu0
      %792 = vmatprep.mubr.f32.mxu0 0.0
      %793 = vmatmul.mubr.f32.gmra.mxu0 %v601
      %v794 = vpop.f32.mrf.mxu0
      %v795 = vadd.f32 %v550, %v794
      %v796 = vpop.f32.mrf.mxu0
      %797 = vmatprep.mubr.f32.mxu0 0.0
      %798 = vmatmul.mubr.f32.gmra.mxu0 %v604
      %v799 = vpop.f32.mrf.mxu0
      %v800 = vadd.f32 %v550, %v799
      %v801 = vpop.f32.mrf.mxu0
      %802 = vmatprep.mubr.f32.mxu0 0.0
      %803 = vmatmul.mubr.f32.gmra.mxu0 %v607
      %v804 = vpop.f32.mrf.mxu0
      %v805 = vadd.f32 %v550, %v804
      %v806 = vpop.f32.mrf.mxu0
      %807 = vmatprep.mubr.f32.mxu0 0.0
      %808 = vmatmul.mubr.f32.gmra.mxu0 %v610
      %v809 = vpop.f32.mrf.mxu0
      %v810 = vadd.f32 %v550, %v809
      %v811 = vpop.f32.mrf.mxu0
      %812 = vmatprep.mubr.f32.mxu0 0.0
      %813 = vmatmul.mubr.f32.gmra.mxu0 %v613
      %v814 = vpop.f32.mrf.mxu0
      %v815 = vadd.f32 %v550, %v814
      %v816 = vpop.f32.mrf.mxu0
      %817 = vmatprep.mubr.f32.mxu0 0.0
      %818 = vmatmul.mubr.f32.gmra.mxu0 %v616
      %v819 = vpop.f32.mrf.mxu0
      %v820 = vadd.f32 %v550, %v819
      %v821 = vpop.f32.mrf.mxu0
      %822 = vmatprep.mubr.f32.mxu0 0.0
      %823 = vmatmul.mubr.f32.gmra.mxu0 %v619
      %v824 = vpop.f32.mrf.mxu0
      %v825 = vadd.f32 %v550, %v824
      %v826 = vpop.f32.mrf.mxu0
      %827 = vmatprep.mubr.f32.mxu0 0.0
      %828 = vmatmul.mubr.f32.gmra.mxu0 %v622
      %v829 = vpop.f32.mrf.mxu0
      %v830 = vadd.f32 %v550, %v829
      %v831 = vpop.f32.mrf.mxu0
      %832 = vmatprep.mubr.f32.mxu0 0.0
      %833 = vmatmul.mubr.f32.gmra.mxu0 %v625
      %v834 = vpop.f32.mrf.mxu0
      %v835 = vadd.f32 %v550, %v834
      %v836 = vpop.f32.mrf.mxu0
      %837 = vmatprep.mubr.f32.mxu0 0.0
      %838 = vmatmul.mubr.f32.gmra.mxu0 %v628
      %v839 = vpop.f32.mrf.mxu0
      %v840 = vadd.f32 %v550, %v839
      %v841 = vpop.f32.mrf.mxu0
      %842 = vmatprep.mubr.f32.mxu0 0.0
      %843 = vmatmul.mubr.f32.gmra.mxu0 %v631
      %v844 = vpop.f32.mrf.mxu0
      %v845 = vadd.f32 %v550, %v844
      %v846 = vpop.f32.mrf.mxu0
      %847 = vmatprep.mubr.f32.mxu0 0.0
      %848 = vmatmul.mubr.f32.gmra.mxu0 %v634
      %v849 = vpop.f32.mrf.mxu0
      %v850 = vadd.f32 %v550, %v849
      %v851 = vpop.f32.mrf.mxu0
      %852 = vmatprep.mubr.f32.mxu0 0.0
      %853 = vmatmul.mubr.f32.gmra.mxu0 %v637
      %v854 = vpop.f32.mrf.mxu0
      %v855 = vadd.f32 %v550, %v854
      %v856 = vpop.f32.mrf.mxu0
      %857 = vmatprep.mubr.f32.mxu0 0.0
      %858 = vmatmul.mubr.f32.gmra.mxu0 %v640
      %v859 = vpop.f32.mrf.mxu0
      %v860 = vadd.f32 %v550, %v859
      %v861 = vpop.f32.mrf.mxu0
      %862 = vmatprep.mubr.f32.mxu0 0.0
      %863 = vmatmul.mubr.f32.gmra.mxu0 %v643
      %v864 = vpop.f32.mrf.mxu0
      %v865 = vadd.f32 %v550, %v864
      %v866 = vpop.f32.mrf.mxu0
      %867 = vmatprep.mubr.f32.mxu0 0.0
      %868 = vmatmul.mubr.f32.gmra.mxu0 %v646
      %v869 = vpop.f32.mrf.mxu0
      %v870 = vadd.f32 %v550, %v869
      %v871 = vpop.f32.mrf.mxu0
      %872 = vdwg.mxu0
      %873 = vst [vmem:[#allocation3] sm:$0xff] %v715
      %874 = vst [vmem:[#allocation3 + $0x8] sm:$0xff] %v720
      %875 = vst [vmem:[#allocation3 + $0x10] sm:$0xff] %v725
      %876 = vst [vmem:[#allocation3 + $0x18] sm:$0xff] %v730
      %877 = vst [vmem:[#allocation3 + $0x20] sm:$0xff] %v735
      %878 = vst [vmem:[#allocation3 + $0x28] sm:$0xff] %v740
      %879 = vst [vmem:[#allocation3 + $0x30] sm:$0xff] %v745
      %880 = vst [vmem:[#allocation3 + $0x38] sm:$0xff] %v750
      %881 = vst [vmem:[#allocation3 + $0x40] sm:$0xff] %v755
      %882 = vst [vmem:[#allocation3 + $0x48] sm:$0xff] %v760
      %883 = vst [vmem:[#allocation3 + $0x50] sm:$0xff] %v765
      %884 = vst [vmem:[#allocation3 + $0x58] sm:$0xff] %v770
      %885 = vst [vmem:[#allocation3 + $0x60] sm:$0xff] %v775
      %886 = vst [vmem:[#allocation3 + $0x68] sm:$0xff] %v780
      %887 = vst [vmem:[#allocation3 + $0x70] sm:$0xff] %v785
      %888 = vst [vmem:[#allocation3 + $0x78] sm:$0xff] %v790
      %889 = vst [vmem:[#allocation3 + $0x80] sm:$0xff] %v795
      %890 = vst [vmem:[#allocation3 + $0x88] sm:$0xff] %v800
      %891 = vst [vmem:[#allocation3 + $0x90] sm:$0xff] %v805
      %892 = vst [vmem:[#allocation3 + $0x98] sm:$0xff] %v810
      %893 = vst [vmem:[#allocation3 + $0xa0] sm:$0xff] %v815
      %894 = vst [vmem:[#allocation3 + $0xa8] sm:$0xff] %v820
      %895 = vst [vmem:[#allocation3 + $0xb0] sm:$0xff] %v825
      %896 = vst [vmem:[#allocation3 + $0xb8] sm:$0xff] %v830
      %897 = vst [vmem:[#allocation3 + $0xc0] sm:$0xff] %v835
      %898 = vst [vmem:[#allocation3 + $0xc8] sm:$0xff] %v840
      %899 = vst [vmem:[#allocation3 + $0xd0] sm:$0xff] %v845
      %900 = vst [vmem:[#allocation3 + $0xd8] sm:$0xff] %v850
      %901 = vst [vmem:[#allocation3 + $0xe0] sm:$0xff] %v855
      %902 = vst [vmem:[#allocation3 + $0xe8] sm:$0xff] %v860
      %903 = vst [vmem:[#allocation3 + $0xf0] sm:$0xff] %v865
      %904 = vst [vmem:[#allocation3 + $0xf8] sm:$0xff] %v870
    $region29: #{tpu_custom_call.1} parent=1 // pred_fallthru
      _
    // Predicated region
    $region30: #{tpu_custom_call.1} parent=1 // pred_check
      _
    $region31: #{tpu_custom_call.1} parent=1 // pred_check_branch
      %906 = sbr.rel (0) target = $region33
    $region32: #{tpu_custom_call.1} parent=1 // pred_region
      %s908 = ssub.s32 4096, 4096
      %909 = vsyncadd [#allocation4], %s908
      %s910 = sshll.u32 [#allocation3], 4
      %s911 = int_to_ptr.vmem [resolvable:$true] %s910
      %916 = dma.vmem_to_hbm [thread:$0]  %s911, 4096, %s5, [#allocation4], 128, 128, 8
    $region33: #{tpu_custom_call.1} parent=1 // pred_fallthru
      _
    // Predicated region
    $region34: #{tpu_custom_call.1} parent=1 // pred_check
      _
    $region35: #{tpu_custom_call.1} parent=1 // pred_check_branch
      %918 = sbr.rel (0) target = $region37
    $region36: #{tpu_custom_call.1} parent=1 // pred_region
      %919 = dma.done [#allocation4], 4096
    $region37: #{tpu_custom_call.1} parent=1 // pred_fallthru
      _
    %920 = vsyncpa [#allocation4], 1

</llo_original>
